<compile_context>
chip_gen: v7x
topology: tpu7x:2x2x1
jax: 0.10.0
libtpu: 0.0.40
codegen_flags: <defaults>
</compile_context>

<pallas_src>
import functools
import math

import jax
import jax.numpy as jnp
from jax import lax
from jax.experimental import pallas as pl
from jax.experimental.pallas import tpu as pltpu


# ----------------------------------------------------------------------------
# static helpers
# ----------------------------------------------------------------------------
def _round_up(x, m):
    return ((x + m - 1) // m) * m


def _pick_pack_factor(feat, rows, *, max_r, max_fp):
    """Replication factor r so the packed width r*feat is a multiple of 128.

    Falls back to 1 (no packing) when packing would require padding
    (rows % r != 0) or an unreasonably wide packed row.
    """
    if feat % 128 == 0:
        return 1
    r = 128 // math.gcd(feat, 128)
    if r > max_r or r * feat > max_fp or rows % r != 0:
        return 1
    return r


def _pick_feature_tile(fp):
    if fp % 128 != 0:
        return fp                       # must take full dim (rare, lane-masked)
    if fp <= 1024:
        return fp
    for cand in (1024, 896, 768, 640, 512, 384, 256, 128):
        if fp % cand == 0:
            return cand
    return 128


def _pick_row_tile(mp, tf, itemsize, target_bytes):
    tm = (target_bytes // (tf * itemsize)) // 8 * 8
    tm = max(8, min(tm, 8192))
    return min(tm, _round_up(mp, 8))


# ----------------------------------------------------------------------------
# fused single-kernel path (whole activation resident in VMEM)
# ----------------------------------------------------------------------------
def _fused_kernel(x_ref, gamma_ref, beta_ref, o_ref, *, m_total, r, feat, eps):
    x = x_ref[...].astype(jnp.float32)                 # (Mp, Fp)
    s = jnp.sum(x, axis=0, keepdims=True)              # per-lane sums (1, Fp)
    sq = jnp.sum(x * x, axis=0, keepdims=True)
    if r > 1:
        # Fold the r lane-replicas of every feature and broadcast the totals
        # back to every replica with one tiny MXU matmul against the 0/1
        # matrix fold[i, j] = (i % feat == j % feat).
        fp = r * feat
        i_f = lax.broadcasted_iota(jnp.int32, (fp, fp), 0) % feat
        j_f = lax.broadcasted_iota(jnp.int32, (fp, fp), 1) % feat
        fold = (i_f == j_f).astype(jnp.float32)
        s = jnp.dot(s, fold, preferred_element_type=jnp.float32)
        sq = jnp.dot(sq, fold, preferred_element_type=jnp.float32)
    inv_m = jnp.float32(1.0 / m_total)
    mean = s * inv_m
    var = jnp.maximum(sq * inv_m - mean * mean, 0.0)   # biased batch variance
    inv_std = lax.rsqrt(var + jnp.float32(eps))
    scale = gamma_ref[...] * inv_std
    shift = beta_ref[...] - mean * scale
    o_ref[...] = (x * scale + shift).astype(o_ref.dtype)


# ----------------------------------------------------------------------------
# two-pass path
# ----------------------------------------------------------------------------
def _stats_kernel(x_ref, stats_ref, *, mp, tm, n_mt_inner, need_mask):
    i = pl.program_id(2)                               # inner row-tile index

    @pl.when(i == 0)
    def _init():
        stats_ref[...] = jnp.zeros_like(stats_ref)

    x = x_ref[...].astype(jnp.float32)
    if need_mask:                                      # ragged last row tile
        row0 = (pl.program_id(0) * n_mt_inner + i) * tm
        rows = lax.broadcasted_iota(jnp.int32, x.shape, 0)
        x = jnp.where(rows < (mp - row0), x, 0.0)
    stats_ref[0:1, :] += jnp.sum(x, axis=0, keepdims=True)
    stats_ref[1:2, :] += jnp.sum(x * x, axis=0, keepdims=True)


def _norm_kernel(x_ref, scale_ref, shift_ref, o_ref):
    x = x_ref[...].astype(jnp.float32)
    o_ref[...] = (x * scale_ref[...] + shift_ref[...]).astype(o_ref.dtype)


# ----------------------------------------------------------------------------
# wrapper
# ----------------------------------------------------------------------------
def afm_batchnorm(x, gamma, beta, *, eps=1e-5,
                  fused_max_elems=768 * 1024,
                  stats_block_bytes=8 * 1024 * 1024,
                  norm_block_bytes=4 * 1024 * 1024):
    """AFM_BatchNorm forward.  x: (B, N, F), gamma/beta: (F,) -> (B, N, F)."""
    B, N, Fdim = x.shape
    M = B * N
    itemsize = jnp.dtype(x.dtype).itemsize
    x2d = x.reshape(M, Fdim)
    gamma_f = gamma.astype(jnp.float32)
    beta_f = beta.astype(jnp.float32)
    vmem_lim = 32 * 1024 * 1024

    # -------- fused path: single kernel, x read once / written once ---------
    if M * Fdim <= fused_max_elems:
        r = _pick_pack_factor(Fdim, M, max_r=16, max_fp=512)
        Fp, Mp = r * Fdim, M // r
        xp = x2d.reshape(Mp, Fp)                       # free row-major repack
        gamma_p = jnp.tile(gamma_f, (r,)).reshape(1, Fp)
        beta_p = jnp.tile(beta_f, (r,)).reshape(1, Fp)
        outp = pl.pallas_call(
            functools.partial(_fused_kernel, m_total=M, r=r, feat=Fdim, eps=eps),
            out_shape=jax.ShapeDtypeStruct((Mp, Fp), x.dtype),
            grid=(1,),
            in_specs=[pl.BlockSpec((Mp, Fp), lambda i: (0, 0)),
                      pl.BlockSpec((1, Fp), lambda i: (0, 0)),
                      pl.BlockSpec((1, Fp), lambda i: (0, 0))],
            out_specs=pl.BlockSpec((Mp, Fp), lambda i: (0, 0)),
            compiler_params=pltpu.CompilerParams(vmem_limit_bytes=vmem_lim),
            cost_estimate=pl.CostEstimate(
                flops=5 * M * Fdim, transcendentals=Fdim,
                bytes_accessed=2 * M * Fdim * itemsize),
        )(xp, gamma_p, beta_p)
        return outp.reshape(B, N, Fdim)

    # -------- two-pass path --------------------------------------------------
    r = _pick_pack_factor(Fdim, M, max_r=16, max_fp=2048)
    Fp, Mp = r * Fdim, M // r
    xp = x2d.reshape(Mp, Fp)
    tf = _pick_feature_tile(Fp)
    n_ft = Fp // tf

    # pass 1: per-lane sum / sum-of-squares, accumulated in a resident (2, tf)
    # block per (chunk, feature tile).  Leading "parallel" chunk axis lets
    # megacore (v7x) split the reduction across both TensorCores.
    tm1 = _pick_row_tile(Mp, tf, itemsize, stats_block_bytes)
    n_mt = pl.cdiv(Mp, tm1)
    n_chunks = 2 if (n_mt % 2 == 0 and n_mt >= 4) else 1
    n_mt_inner = n_mt // n_chunks
    need_mask = (n_mt * tm1 != Mp)

    stats = pl.pallas_call(
        functools.partial(_stats_kernel, mp=Mp, tm=tm1,
                          n_mt_inner=n_mt_inner, need_mask=need_mask),
        out_shape=jax.ShapeDtypeStruct((n_chunks, 2, Fp), jnp.float32),
        grid=(n_chunks, n_ft, n_mt_inner),
        in_specs=[pl.BlockSpec((tm1, tf),
                               lambda c, j, i: (c * n_mt_inner + i, j))],
        out_specs=pl.BlockSpec((None, 2, tf), lambda c, j, i: (c, 0, j)),
        compiler_params=pltpu.CompilerParams(
            dimension_semantics=("parallel", "parallel", "arbitrary"),
            vmem_limit_bytes=vmem_lim),
        cost_estimate=pl.CostEstimate(
            flops=3 * Mp * Fp, transcendentals=0,
            bytes_accessed=Mp * Fp * itemsize + n_chunks * 2 * Fp * 4),
    )(xp)

    # Fold chunk partials and lane replicas, then fold the affine into a
    # per-feature scale/shift (tiny f32 JAX ops on (n_chunks, 2, Fp)).
    s = jnp.sum(stats[:, 0, :], axis=0).reshape(r, Fdim).sum(axis=0)
    sq = jnp.sum(stats[:, 1, :], axis=0).reshape(r, Fdim).sum(axis=0)
    inv_m = 1.0 / M
    mean = s * inv_m
    var = jnp.maximum(sq * inv_m - mean * mean, 0.0)   # biased batch variance
    inv_std = lax.rsqrt(var + eps)
    scale = gamma_f * inv_std
    shift = beta_f - mean * scale
    scale_p = jnp.tile(scale, (r,)).reshape(1, Fp)     # stays f32
    shift_p = jnp.tile(shift, (r,)).reshape(1, Fp)

    # pass 2: y = x * scale + shift, fully parallel.  Output shape is the
    # exact (unpadded) row count; the ragged last row tile's OOB writes are
    # discarded by Pallas (no jnp.pad / post-slice copies).
    tm2 = _pick_row_tile(Mp, tf, itemsize, norm_block_bytes)
    n_mt2 = pl.cdiv(Mp, tm2)
    outp = pl.pallas_call(
        _norm_kernel,
        out_shape=jax.ShapeDtypeStruct((Mp, Fp), x.dtype),
        grid=(n_mt2, n_ft),
        in_specs=[pl.BlockSpec((tm2, tf), lambda i, j: (i, j)),
                  pl.BlockSpec((1, tf), lambda i, j: (0, j)),
                  pl.BlockSpec((1, tf), lambda i, j: (0, j))],
        out_specs=pl.BlockSpec((tm2, tf), lambda i, j: (i, j)),
        compiler_params=pltpu.CompilerParams(
            dimension_semantics=("parallel", "parallel"),
            vmem_limit_bytes=vmem_lim),
        cost_estimate=pl.CostEstimate(
            flops=2 * Mp * Fp, transcendentals=0,
            bytes_accessed=2 * Mp * Fp * itemsize),
    )(xp, scale_p, shift_p)

    return outp.reshape(B, N, Fdim)


def afm_batchnorm_ref(x, gamma, beta, *, eps=1e-5):
    # Pure-JAX reference mirroring PyTorch BatchNorm1d training-mode forward.
    xf = x.astype(jnp.float32)
    mean = jnp.mean(xf, axis=(0, 1), keepdims=True)
    var = jnp.mean((xf - mean) ** 2, axis=(0, 1), keepdims=True)  # biased
    y = (xf - mean) / jnp.sqrt(var + eps)
    return (y * gamma.reshape(1, 1, -1) + beta.reshape(1, 1, -1)).astype(x.dtype)


if __name__ == "__main__":
    key = jax.random.PRNGKey(0)
    k1, k2, k3, k4 = jax.random.split(key, 4)

    # --- small case (fused single-kernel path): batch=2, node_num=8, F=32 ---
    B, N, F = 2, 8, 32
    x = jax.random.normal(k1, (B, N, F), dtype=jnp.float32)
    gamma = jnp.ones((F,), dtype=jnp.float32)   # BatchNorm1d default affine init
    beta = jnp.zeros((F,), dtype=jnp.float32)
    out = jax.block_until_ready(afm_batchnorm(x, gamma, beta))
    ref = afm_batchnorm_ref(x, gamma, beta)
    assert out.shape == (B, N, F)
    assert jnp.allclose(out, ref, atol=1e-4, rtol=1e-4)

    # --- larger case forced onto the two-pass path (exercises lane packing,
    #     chunk-parallel stats, ragged last row tile, exact-shape output) ---
    B2, N2, F2 = 2, 500, 64
    x2 = jax.random.normal(k2, (B2, N2, F2), dtype=jnp.float32) * 1.5 + 0.7
    gamma2 = 1.0 + 0.1 * jax.random.normal(k3, (F2,), dtype=jnp.float32)
    beta2 = 0.1 * jax.random.normal(k4, (F2,), dtype=jnp.float32)
    out2 = jax.block_until_ready(
        afm_batchnorm(x2, gamma2, beta2, fused_max_elems=0,
                      stats_block_bytes=64 * 1024, norm_block_bytes=64 * 1024))
    ref2 = afm_batchnorm_ref(x2, gamma2, beta2)
    assert out2.shape == (B2, N2, F2)
    assert jnp.allclose(out2, ref2, atol=1e-3, rtol=1e-3)

    # TODO(synk): BatchNorm1d running_mean/running_var momentum bookkeeping is
    # module state only and does not affect this forward output.
    print("KERNEL_OK")
</pallas_src>

<mosaic_0001>
module attributes {stable_mosaic.version = 11 : i64} {
  func.func @_fused_kernel(%arg0: i32, %arg1: memref<4x128xf32, #tpu.memory_space<vmem>>, %arg2: memref<1x128xf32, #tpu.memory_space<vmem>>, %arg3: memref<1x128xf32, #tpu.memory_space<vmem>>, %arg4: memref<4x128xf32, #tpu.memory_space<vmem>>) attributes {dimension_semantics = [#tpu.dimension_semantics<arbitrary>], iteration_bounds = array<i64: 1>, scalar_prefetch = 0 : i64, scratch_operands = 0 : i64, tpu.core_type = #tpu.core_type<tc>, window_params = [{pipeline_mode = #tpu.pipeline_mode<synchronous>, transform_indices = @transform_0, window_bounds = array<i64: 4, 128>}, {pipeline_mode = #tpu.pipeline_mode<synchronous>, transform_indices = @transform_1, window_bounds = array<i64: 1, 128>}, {pipeline_mode = #tpu.pipeline_mode<synchronous>, transform_indices = @transform_2, window_bounds = array<i64: 1, 128>}, {pipeline_mode = #tpu.pipeline_mode<synchronous>, transform_indices = @transform_3, window_bounds = array<i64: 4, 128>}]} {
    %c0 = arith.constant 0 : index
    %c0_0 = arith.constant 0 : index
    %0 = vector.load %arg1[%c0, %c0_0] : memref<4x128xf32, #tpu.memory_space<vmem>>, vector<4x128xf32>
    %cst = arith.constant dense<0.000000e+00> : vector<128xf32>
    %1 = vector.multi_reduction <add>, %0, %cst [0] : vector<4x128xf32> to vector<128xf32>
    %2 = vector.shape_cast %1 : vector<128xf32> to vector<1x128xf32>
    %3 = arith.mulf %0, %0 : vector<4x128xf32>
    %cst_1 = arith.constant dense<0.000000e+00> : vector<128xf32>
    %4 = vector.multi_reduction <add>, %3, %cst_1 [0] : vector<4x128xf32> to vector<128xf32>
    %5 = vector.shape_cast %4 : vector<128xf32> to vector<1x128xf32>
    %6 = tpu.iota {dimensions = array<i32: 0>} : vector<128x128xi32>
    %c32_i32 = arith.constant 32 : i32
    %c0_i32 = arith.constant 0 : i32
    %7 = arith.cmpi eq, %c32_i32, %c0_i32 : i32
    %c1_i32 = arith.constant 1 : i32
    %8 = arith.select %7, %c1_i32, %c32_i32 : i32
    %9 = vector.broadcast %8 : i32 to vector<128x128xi32>
    %10 = arith.remsi %6, %9 : vector<128x128xi32>
    %c0_i32_2 = arith.constant 0 : i32
    %11 = vector.broadcast %c0_i32_2 : i32 to vector<128x128xi32>
    %12 = arith.cmpi ne, %10, %11 : vector<128x128xi32>
    %c0_i32_3 = arith.constant 0 : i32
    %13 = vector.broadcast %c0_i32_3 : i32 to vector<128x128xi32>
    %14 = arith.cmpi slt, %10, %13 : vector<128x128xi32>
    %c0_i32_4 = arith.constant 0 : i32
    %15 = arith.cmpi slt, %8, %c0_i32_4 : i32
    %16 = vector.broadcast %15 : i1 to vector<128x128xi1>
    %17 = vector.broadcast %16 : vector<128x128xi1> to vector<128x128xi1>
    %18 = arith.xori %14, %17 : vector<128x128xi1>
    %19 = arith.andi %18, %12 : vector<128x128xi1>
    %20 = vector.broadcast %8 : i32 to vector<128x128xi32>
    %21 = arith.addi %10, %20 : vector<128x128xi32>
    %22 = arith.select %19, %21, %10 : vector<128x128xi1>, vector<128x128xi32>
    %23 = tpu.iota {dimensions = array<i32: 1>} : vector<128x128xi32>
    %c32_i32_5 = arith.constant 32 : i32
    %c0_i32_6 = arith.constant 0 : i32
    %24 = arith.cmpi eq, %c32_i32_5, %c0_i32_6 : i32
    %c1_i32_7 = arith.constant 1 : i32
    %25 = arith.select %24, %c1_i32_7, %c32_i32_5 : i32
    %26 = vector.broadcast %25 : i32 to vector<128x128xi32>
    %27 = arith.remsi %23, %26 : vector<128x128xi32>
    %c0_i32_8 = arith.constant 0 : i32
    %28 = vector.broadcast %c0_i32_8 : i32 to vector<128x128xi32>
    %29 = arith.cmpi ne, %27, %28 : vector<128x128xi32>
    %c0_i32_9 = arith.constant 0 : i32
    %30 = vector.broadcast %c0_i32_9 : i32 to vector<128x128xi32>
    %31 = arith.cmpi slt, %27, %30 : vector<128x128xi32>
    %c0_i32_10 = arith.constant 0 : i32
    %32 = arith.cmpi slt, %25, %c0_i32_10 : i32
    %33 = vector.broadcast %32 : i1 to vector<128x128xi1>
    %34 = vector.broadcast %33 : vector<128x128xi1> to vector<128x128xi1>
    %35 = arith.xori %31, %34 : vector<128x128xi1>
    %36 = arith.andi %35, %29 : vector<128x128xi1>
    %37 = vector.broadcast %25 : i32 to vector<128x128xi32>
    %38 = arith.addi %27, %37 : vector<128x128xi32>
    %39 = arith.select %36, %38, %27 : vector<128x128xi1>, vector<128x128xi32>
    %40 = arith.cmpi eq, %22, %39 : vector<128x128xi32>
    %41 = arith.extui %40 : vector<128x128xi1> to vector<128x128xi32>
    %42 = arith.sitofp %41 : vector<128x128xi32> to vector<128x128xf32>
    %cst_11 = arith.constant dense<0.000000e+00> : vector<1x128xf32>
    %43 = tpu.matmul %2, %42, %cst_11 {dimension_numbers = #tpu.dot_dimension_numbers<[1], [0], [0], [1], [0, 0, 1, 1], [], []>} : vector<1x128xf32>, vector<128x128xf32>, vector<1x128xf32> -> vector<1x128xf32>
    %cst_12 = arith.constant dense<0.000000e+00> : vector<1x128xf32>
    %44 = tpu.matmul %5, %42, %cst_12 {dimension_numbers = #tpu.dot_dimension_numbers<[1], [0], [0], [1], [0, 0, 1, 1], [], []>} : vector<1x128xf32>, vector<128x128xf32>, vector<1x128xf32> -> vector<1x128xf32>
    %cst_13 = arith.constant 6.250000e-02 : f32
    %45 = vector.broadcast %cst_13 : f32 to vector<1x128xf32>
    %46 = arith.mulf %43, %45 : vector<1x128xf32>
    %cst_14 = arith.constant 6.250000e-02 : f32
    %47 = vector.broadcast %cst_14 : f32 to vector<1x128xf32>
    %48 = arith.mulf %44, %47 : vector<1x128xf32>
    %49 = arith.mulf %46, %46 : vector<1x128xf32>
    %50 = arith.subf %48, %49 : vector<1x128xf32>
    %cst_15 = arith.constant 0.000000e+00 : f32
    %51 = vector.broadcast %cst_15 : f32 to vector<1x128xf32>
    %52 = arith.maximumf %50, %51 : vector<1x128xf32>
    %cst_16 = arith.constant 9.99999974E-6 : f32
    %53 = vector.broadcast %cst_16 : f32 to vector<1x128xf32>
    %54 = arith.addf %52, %53 : vector<1x128xf32>
    %55 = math.rsqrt %54 : vector<1x128xf32>
    %c0_17 = arith.constant 0 : index
    %c0_18 = arith.constant 0 : index
    %56 = vector.load %arg2[%c0_17, %c0_18] : memref<1x128xf32, #tpu.memory_space<vmem>>, vector<1x128xf32>
    %57 = arith.mulf %56, %55 : vector<1x128xf32>
    %c0_19 = arith.constant 0 : index
    %c0_20 = arith.constant 0 : index
    %58 = vector.load %arg3[%c0_19, %c0_20] : memref<1x128xf32, #tpu.memory_space<vmem>>, vector<1x128xf32>
    %59 = arith.mulf %46, %57 : vector<1x128xf32>
    %60 = arith.subf %58, %59 : vector<1x128xf32>
    %61 = vector.broadcast %57 : vector<1x128xf32> to vector<4x128xf32>
    %62 = arith.mulf %0, %61 : vector<4x128xf32>
    %63 = vector.broadcast %60 : vector<1x128xf32> to vector<4x128xf32>
    %64 = arith.addf %62, %63 : vector<4x128xf32>
    %c0_21 = arith.constant 0 : index
    %c0_22 = arith.constant 0 : index
    %65 = vector.load %arg4[%c0_21, %c0_22] : memref<4x128xf32, #tpu.memory_space<vmem>>, vector<4x128xf32>
    tpu.vector_store %arg4[%c0_21, %c0_22], %64 {strides = array<i32>} : memref<4x128xf32, #tpu.memory_space<vmem>>, vector<4x128xf32>,
    return
  }
  func.func @transform_0(%arg0: i32) -> (i32, i32) {
    %c0_i32 = arith.constant 0 : i32
    %c0_i32_0 = arith.constant 0 : i32
    %c0_i32_1 = arith.constant 0 : i32
    return %c0_i32, %c0_i32_0 : i32, i32
  }
  func.func @transform_1(%arg0: i32) -> (i32, i32) {
    %c0_i32 = arith.constant 0 : i32
    %c0_i32_0 = arith.constant 0 : i32
    %c0_i32_1 = arith.constant 0 : i32
    return %c0_i32, %c0_i32_0 : i32, i32
  }
  func.func @transform_2(%arg0: i32) -> (i32, i32) {
    %c0_i32 = arith.constant 0 : i32
    %c0_i32_0 = arith.constant 0 : i32
    %c0_i32_1 = arith.constant 0 : i32
    return %c0_i32, %c0_i32_0 : i32, i32
  }
  func.func @transform_3(%arg0: i32) -> (i32, i32) {
    %c0_i32 = arith.constant 0 : i32
    %c0_i32_0 = arith.constant 0 : i32
    %c0_i32_1 = arith.constant 0 : i32
    return %c0_i32, %c0_i32_0 : i32, i32
  }
}

</mosaic_0001>

<llo_original>
// kernel: tpu_custom_call.1
$region0: #{tpu_custom_call.1}
  #allocation0 [shape = 'u32[]', space=smem, size = 0x4, offset = 0x4, fixed_abs, tag = 'smem constant byte address 0x4 - core index']
  #allocation1 [shape = 'u32[144,128]{1,0:T(1,128)}', space=vmem, size = 0x12000, scoped, tag = 'internal scratch']
  %s0 = inlined_call_operand.hbm [shape: f32[4,128], index: 0, kind: input, shape index: {}]
  %s1 = inlined_call_operand.vmem [shape: f32[1,128], index: 1, kind: input, shape index: {}]
  %s2 = inlined_call_operand.vmem [shape: f32[1,128], index: 2, kind: input, shape index: {}]
  %s3 = inlined_call_operand.hbm [shape: f32[4,128], index: 3, kind: output, shape index: {}]
  %s4 = sld [smem:[#allocation0]]
  $region26: #{tpu_custom_call.1} parent=0
    _
  %s6 = ssub.s32 1, %s4
  %s7 = scalar_select 0, %s6, %s4
  $region1: #{tpu_custom_call.1} parent=0
    #allocation2 [shape = 'u8[2048]{0}', space=vmem, size = 0x800, scoped, tag = 'input window, operand 0, single buffered']
    #allocation3 [shape = 's32[1]{0}', space=sflag, size = 0x4, scoped, tag = 'scoped memory for tpu_custom_call.1']
    #allocation4 [shape = 's32[1]{0}', space=sflag, size = 0x4, scoped, tag = 'scoped memory for tpu_custom_call.1']
    #allocation5 [shape = 'u8[2048]{0}', space=vmem, size = 0x800, scoped, tag = 'output window, operand 0, single buffered']
    %8 = vsyncpa [#allocation3], 0
    %9 = vsyncpa [#allocation4], 0
    // Predicated region
    $region2: #{tpu_custom_call.1} parent=1 // pred_check
      _
    $region3: #{tpu_custom_call.1} parent=1 // pred_check_branch
      %11 = sbr.rel (0) target = $region5
    $region4: #{tpu_custom_call.1} parent=1 // pred_region
      %s13 = ssub.s32 64, 64
      %14 = vsyncadd [#allocation3], %s13
      %s16 = sshll.u32 [#allocation2], 4
      %s17 = int_to_ptr.vmem [resolvable:$true] %s16
      %19 = dma.hbm_to_vmem [thread:$0]  %s0, 64, %s17, [#allocation3]
    $region5: #{tpu_custom_call.1} parent=1 // pred_fallthru
      _
    // Predicated region
    $region6: #{tpu_custom_call.1} parent=1 // pred_check
      _
    $region7: #{tpu_custom_call.1} parent=1 // pred_check_branch
      %21 = sbr.rel (0) target = $region9
    $region8: #{tpu_custom_call.1} parent=1 // pred_region
      _
    $region9: #{tpu_custom_call.1} parent=1 // pred_fallthru
      _
    // Predicated region
    $region10: #{tpu_custom_call.1} parent=1 // pred_check
      _
    $region11: #{tpu_custom_call.1} parent=1 // pred_check_branch
      %23 = sbr.rel (0) target = $region13
    $region12: #{tpu_custom_call.1} parent=1 // pred_region
      _
    $region13: #{tpu_custom_call.1} parent=1 // pred_fallthru
      _
    // Predicated region
    $region14: #{tpu_custom_call.1} parent=1 // pred_check
      _
    $region15: #{tpu_custom_call.1} parent=1 // pred_check_branch
      %25 = sbr.rel (0) target = $region17
    $region16: #{tpu_custom_call.1} parent=1 // pred_region
      %26 = dma.done [#allocation3], 64
    $region17: #{tpu_custom_call.1} parent=1 // pred_fallthru
      _
    %v27 = vld [vmem:[#allocation2] sm:$0xf]
    %vm28 = vcmask 1043456
    %v29 = vsel %vm28, %v27, 0.0
    %v30 = vrot.slane %v29, 4
    %v31 = vadd.f32 %v29, %v30
    %v32 = vrot.slane %v31, 2
    %v33 = vadd.f32 %v31, %v32
    %v34 = vrot.slane %v33, 1
    %v35 = vadd.f32 %v33, %v34
    %v36 = vmul.f32 %v27, %v27
    %v37 = vsel %vm28, %v36, 0.0
    %v38 = vrot.slane %v37, 4
    %v39 = vadd.f32 %v37, %v38
    %v40 = vrot.slane %v39, 2
    %v41 = vadd.f32 %v39, %v40
    %v42 = vrot.slane %v41, 1
    %v43 = vadd.f32 %v41, %v42
    %v44 = vlaneseq
    %v45 = vshrl.u32 %v44, 7
    %v46 = vadd.s32 %v45, 8
    %v47 = vadd.s32 %v45, 16
    %v48 = vadd.s32 %v45, 24
    %v49 = vadd.s32 %v45, 32
    %v50 = vadd.s32 %v45, 40
    %v51 = vadd.s32 %v45, 48
    %v52 = vadd.s32 %v45, 56
    %v53 = vadd.s32 %v45, 64
    %v54 = vadd.s32 %v45, 72
    %v55 = vadd.s32 %v45, 80
    %v56 = vadd.s32 %v45, 88
    %v57 = vadd.s32 %v45, 96
    %v58 = vadd.s32 %v45, 104
    %v59 = vadd.s32 %v45, 112
    %v60 = vadd.s32 %v45, 120
    %vm61 = vcmp.lt.s32.totalorder %v45, 0
    %v62 = vsub.s32 0, %v45
    %v63 = vsel %vm61, %v62, %v45
    %v64 = vshrl.u32 %v63, 5
    %v65 = vand.u32 %v63, 31
    %v66 = vsub.s32 0, %v65
    %v67 = vsel %vm61, %v66, %v65
    %vm68 = vcmp.lt.s32.totalorder %v46, 0
    %v69 = vsub.s32 0, %v46
    %v70 = vsel %vm68, %v69, %v46
    %v71 = vshrl.u32 %v70, 5
    %v72 = vand.u32 %v70, 31
    %v73 = vsub.s32 0, %v72
    %v74 = vsel %vm68, %v73, %v72
    %vm75 = vcmp.lt.s32.totalorder %v47, 0
    %v76 = vsub.s32 0, %v47
    %v77 = vsel %vm75, %v76, %v47
    %v78 = vshrl.u32 %v77, 5
    %v79 = vand.u32 %v77, 31
    %v80 = vsub.s32 0, %v79
    %v81 = vsel %vm75, %v80, %v79
    %vm82 = vcmp.lt.s32.totalorder %v48, 0
    %v83 = vsub.s32 0, %v48
    %v84 = vsel %vm82, %v83, %v48
    %v85 = vshrl.u32 %v84, 5
    %v86 = vand.u32 %v84, 31
    %v87 = vsub.s32 0, %v86
    %v88 = vsel %vm82, %v87, %v86
    %vm89 = vcmp.lt.s32.totalorder %v49, 0
    %v90 = vsub.s32 0, %v49
    %v91 = vsel %vm89, %v90, %v49
    %v92 = vshrl.u32 %v91, 5
    %v93 = vand.u32 %v91, 31
    %v94 = vsub.s32 0, %v93
    %v95 = vsel %vm89, %v94, %v93
    %vm96 = vcmp.lt.s32.totalorder %v50, 0
    %v97 = vsub.s32 0, %v50
    %v98 = vsel %vm96, %v97, %v50
    %v99 = vshrl.u32 %v98, 5
    %v100 = vand.u32 %v98, 31
    %v101 = vsub.s32 0, %v100
    %v102 = vsel %vm96, %v101, %v100
    %vm103 = vcmp.lt.s32.totalorder %v51, 0
    %v104 = vsub.s32 0, %v51
    %v105 = vsel %vm103, %v104, %v51
    %v106 = vshrl.u32 %v105, 5
    %v107 = vand.u32 %v105, 31
    %v108 = vsub.s32 0, %v107
    %v109 = vsel %vm103, %v108, %v107
    %vm110 = vcmp.lt.s32.totalorder %v52, 0
    %v111 = vsub.s32 0, %v52
    %v112 = vsel %vm110, %v111, %v52
    %v113 = vshrl.u32 %v112, 5
    %v114 = vand.u32 %v112, 31
    %v115 = vsub.s32 0, %v114
    %v116 = vsel %vm110, %v115, %v114
    %vm117 = vcmp.lt.s32.totalorder %v53, 0
    %v118 = vsub.s32 0, %v53
    %v119 = vsel %vm117, %v118, %v53
    %v120 = vshrl.u32 %v119, 5
    %v121 = vand.u32 %v119, 31
    %v122 = vsub.s32 0, %v121
    %v123 = vsel %vm117, %v122, %v121
    %vm124 = vcmp.lt.s32.totalorder %v54, 0
    %v125 = vsub.s32 0, %v54
    %v126 = vsel %vm124, %v125, %v54
    %v127 = vshrl.u32 %v126, 5
    %v128 = vand.u32 %v126, 31
    %v129 = vsub.s32 0, %v128
    %v130 = vsel %vm124, %v129, %v128
    %vm131 = vcmp.lt.s32.totalorder %v55, 0
    %v132 = vsub.s32 0, %v55
    %v133 = vsel %vm131, %v132, %v55
    %v134 = vshrl.u32 %v133, 5
    %v135 = vand.u32 %v133, 31
    %v136 = vsub.s32 0, %v135
    %v137 = vsel %vm131, %v136, %v135
    %vm138 = vcmp.lt.s32.totalorder %v56, 0
    %v139 = vsub.s32 0, %v56
    %v140 = vsel %vm138, %v139, %v56
    %v141 = vshrl.u32 %v140, 5
    %v142 = vand.u32 %v140, 31
    %v143 = vsub.s32 0, %v142
    %v144 = vsel %vm138, %v143, %v142
    %vm145 = vcmp.lt.s32.totalorder %v57, 0
    %v146 = vsub.s32 0, %v57
    %v147 = vsel %vm145, %v146, %v57
    %v148 = vshrl.u32 %v147, 5
    %v149 = vand.u32 %v147, 31
    %v150 = vsub.s32 0, %v149
    %v151 = vsel %vm145, %v150, %v149
    %vm152 = vcmp.lt.s32.totalorder %v58, 0
    %v153 = vsub.s32 0, %v58
    %v154 = vsel %vm152, %v153, %v58
    %v155 = vshrl.u32 %v154, 5
    %v156 = vand.u32 %v154, 31
    %v157 = vsub.s32 0, %v156
    %v158 = vsel %vm152, %v157, %v156
    %vm159 = vcmp.lt.s32.totalorder %v59, 0
    %v160 = vsub.s32 0, %v59
    %v161 = vsel %vm159, %v160, %v59
    %v162 = vshrl.u32 %v161, 5
    %v163 = vand.u32 %v161, 31
    %v164 = vsub.s32 0, %v163
    %v165 = vsel %vm159, %v164, %v163
    %vm166 = vcmp.lt.s32.totalorder %v60, 0
    %v167 = vsub.s32 0, %v60
    %v168 = vsel %vm166, %v167, %v60
    %v169 = vshrl.u32 %v168, 5
    %v170 = vand.u32 %v168, 31
    %v171 = vsub.s32 0, %v170
    %v172 = vsel %vm166, %v171, %v170
    %vm173 = vcmp.ne.s32.totalorder %v67, 0
    %vm174 = vcmp.ne.s32.totalorder %v74, 0
    %vm175 = vcmp.ne.s32.totalorder %v81, 0
    %vm176 = vcmp.ne.s32.totalorder %v88, 0
    %vm177 = vcmp.ne.s32.totalorder %v95, 0
    %vm178 = vcmp.ne.s32.totalorder %v102, 0
    %vm179 = vcmp.ne.s32.totalorder %v109, 0
    %vm180 = vcmp.ne.s32.totalorder %v116, 0
    %vm181 = vcmp.ne.s32.totalorder %v123, 0
    %vm182 = vcmp.ne.s32.totalorder %v130, 0
    %vm183 = vcmp.ne.s32.totalorder %v137, 0
    %vm184 = vcmp.ne.s32.totalorder %v144, 0
    %vm185 = vcmp.ne.s32.totalorder %v151, 0
    %vm186 = vcmp.ne.s32.totalorder %v158, 0
    %vm187 = vcmp.ne.s32.totalorder %v165, 0
    %vm188 = vcmp.ne.s32.totalorder %v172, 0
    %vm189 = vcmp.lt.s32.totalorder %v67, 0
    %vm190 = vcmp.lt.s32.totalorder %v74, 0
    %vm191 = vcmp.lt.s32.totalorder %v81, 0
    %vm192 = vcmp.lt.s32.totalorder %v88, 0
    %vm193 = vcmp.lt.s32.totalorder %v95, 0
    %vm194 = vcmp.lt.s32.totalorder %v102, 0
    %vm195 = vcmp.lt.s32.totalorder %v109, 0
    %vm196 = vcmp.lt.s32.totalorder %v116, 0
    %vm197 = vcmp.lt.s32.totalorder %v123, 0
    %vm198 = vcmp.lt.s32.totalorder %v130, 0
    %vm199 = vcmp.lt.s32.totalorder %v137, 0
    %vm200 = vcmp.lt.s32.totalorder %v144, 0
    %vm201 = vcmp.lt.s32.totalorder %v151, 0
    %vm202 = vcmp.lt.s32.totalorder %v158, 0
    %vm203 = vcmp.lt.s32.totalorder %v165, 0
    %vm204 = vcmp.lt.s32.totalorder %v172, 0
    %vm205 = vmand %vm189, %vm173
    %vm206 = vmand %vm190, %vm174
    %vm207 = vmand %vm191, %vm175
    %vm208 = vmand %vm192, %vm176
    %vm209 = vmand %vm193, %vm177
    %vm210 = vmand %vm194, %vm178
    %vm211 = vmand %vm195, %vm179
    %vm212 = vmand %vm196, %vm180
    %vm213 = vmand %vm197, %vm181
    %vm214 = vmand %vm198, %vm182
    %vm215 = vmand %vm199, %vm183
    %vm216 = vmand %vm200, %vm184
    %vm217 = vmand %vm201, %vm185
    %vm218 = vmand %vm202, %vm186
    %vm219 = vmand %vm203, %vm187
    %vm220 = vmand %vm204, %vm188
    %v221 = vadd.s32 %v67, 32
    %v222 = vadd.s32 %v74, 32
    %v223 = vadd.s32 %v81, 32
    %v224 = vadd.s32 %v88, 32
    %v225 = vadd.s32 %v95, 32
    %v226 = vadd.s32 %v102, 32
    %v227 = vadd.s32 %v109, 32
    %v228 = vadd.s32 %v116, 32
    %v229 = vadd.s32 %v123, 32
    %v230 = vadd.s32 %v130, 32
    %v231 = vadd.s32 %v137, 32
    %v232 = vadd.s32 %v144, 32
    %v233 = vadd.s32 %v151, 32
    %v234 = vadd.s32 %v158, 32
    %v235 = vadd.s32 %v165, 32
    %v236 = vadd.s32 %v172, 32
    %v237 = vsel %vm205, %v221, %v67
    %v238 = vsel %vm206, %v222, %v74
    %v239 = vsel %vm207, %v223, %v81
    %v240 = vsel %vm208, %v224, %v88
    %v241 = vsel %vm209, %v225, %v95
    %v242 = vsel %vm210, %v226, %v102
    %v243 = vsel %vm211, %v227, %v109
    %v244 = vsel %vm212, %v228, %v116
    %v245 = vsel %vm213, %v229, %v123
    %v246 = vsel %vm214, %v230, %v130
    %v247 = vsel %vm215, %v231, %v137
    %v248 = vsel %vm216, %v232, %v144
    %v249 = vsel %vm217, %v233, %v151
    %v250 = vsel %vm218, %v234, %v158
    %v251 = vsel %vm219, %v235, %v165
    %v252 = vsel %vm220, %v236, %v172
    %v253 = vlaneseq
    %v254 = vand.u32 %v253, 127
    %vm255 = vcmp.lt.s32.totalorder %v254, 0
    %v256 = vsub.s32 0, %v254
    %v257 = vsel %vm255, %v256, %v254
    %v258 = vshrl.u32 %v257, 5
    %v259 = vand.u32 %v257, 31
    %v260 = vsub.s32 0, %v259
    %v261 = vsel %vm255, %v260, %v259
    %vm262 = vcmp.ne.s32.totalorder %v261, 0
    %vm263 = vcmp.lt.s32.totalorder %v261, 0
    %vm264 = vmand %vm263, %vm262
    %v265 = vadd.s32 %v261, 32
    %v266 = vsel %vm264, %v265, %v261
    %vm267 = vcmp.eq.s32.totalorder %v237, %v266
    %vm268 = vcmp.eq.s32.totalorder %v238, %v266
    %vm269 = vcmp.eq.s32.totalorder %v239, %v266
    %vm270 = vcmp.eq.s32.totalorder %v240, %v266
    %vm271 = vcmp.eq.s32.totalorder %v241, %v266
    %vm272 = vcmp.eq.s32.totalorder %v242, %v266
    %vm273 = vcmp.eq.s32.totalorder %v243, %v266
    %vm274 = vcmp.eq.s32.totalorder %v244, %v266
    %vm275 = vcmp.eq.s32.totalorder %v245, %v266
    %vm276 = vcmp.eq.s32.totalorder %v246, %v266
    %vm277 = vcmp.eq.s32.totalorder %v247, %v266
    %vm278 = vcmp.eq.s32.totalorder %v248, %v266
    %vm279 = vcmp.eq.s32.totalorder %v249, %v266
    %vm280 = vcmp.eq.s32.totalorder %v250, %v266
    %vm281 = vcmp.eq.s32.totalorder %v251, %v266
    %vm282 = vcmp.eq.s32.totalorder %v252, %v266
    %v283 = vsel %vm267, 1, 0
    %v284 = vsel %vm268, 1, 0
    %v285 = vsel %vm269, 1, 0
    %v286 = vsel %vm270, 1, 0
    %v287 = vsel %vm271, 1, 0
    %v288 = vsel %vm272, 1, 0
    %v289 = vsel %vm273, 1, 0
    %v290 = vsel %vm274, 1, 0
    %v291 = vsel %vm275, 1, 0
    %v292 = vsel %vm276, 1, 0
    %v293 = vsel %vm277, 1, 0
    %v294 = vsel %vm278, 1, 0
    %v295 = vsel %vm279, 1, 0
    %v296 = vsel %vm280, 1, 0
    %v297 = vsel %vm281, 1, 0
    %v298 = vsel %vm282, 1, 0
    %v299 = vcvt.s32.f32 %v283
    %v300 = vcvt.s32.f32 %v284
    %v301 = vcvt.s32.f32 %v285
    %v302 = vcvt.s32.f32 %v286
    %v303 = vcvt.s32.f32 %v287
    %v304 = vcvt.s32.f32 %v288
    %v305 = vcvt.s32.f32 %v289
    %v306 = vcvt.s32.f32 %v290
    %v307 = vcvt.s32.f32 %v291
    %v308 = vcvt.s32.f32 %v292
    %v309 = vcvt.s32.f32 %v293
    %v310 = vcvt.s32.f32 %v294
    %v311 = vcvt.s32.f32 %v295
    %v312 = vcvt.s32.f32 %v296
    %v313 = vcvt.s32.f32 %v297
    %v314 = vcvt.s32.f32 %v298
    %315 = vmatprep.subr.mxu0 0.0
    %316 = vmatpush1.msra.mxu0 %v299
    %317 = vmatprep.subr.mxu0 0.0
    %318 = vmatpush1.msra.mxu0 %v300
    %319 = vmatprep.subr.mxu0 0.0
    %320 = vmatpush1.msra.mxu0 %v301
    %321 = vmatprep.subr.mxu0 0.0
    %322 = vmatpush1.msra.mxu0 %v302
    %323 = vmatprep.subr.mxu0 0.0
    %324 = vmatpush1.msra.mxu0 %v303
    %325 = vmatprep.subr.mxu0 0.0
    %326 = vmatpush1.msra.mxu0 %v304
    %327 = vmatprep.subr.mxu0 0.0
    %328 = vmatpush1.msra.mxu0 %v305
    %329 = vmatprep.subr.mxu0 0.0
    %330 = vmatpush1.msra.mxu0 %v306
    %331 = vmatprep.subr.mxu0 0.0
    %332 = vmatpush1.msra.mxu0 %v307
    %333 = vmatprep.subr.mxu0 0.0
    %334 = vmatpush1.msra.mxu0 %v308
    %335 = vmatprep.subr.mxu0 0.0
    %336 = vmatpush1.msra.mxu0 %v309
    %337 = vmatprep.subr.mxu0 0.0
    %338 = vmatpush1.msra.mxu0 %v310
    %339 = vmatprep.subr.mxu0 0.0
    %340 = vmatpush1.msra.mxu0 %v311
    %341 = vmatprep.subr.mxu0 0.0
    %342 = vmatpush1.msra.mxu0 %v312
    %343 = vmatprep.subr.mxu0 0.0
    %344 = vmatpush1.msra.mxu0 %v313
    %345 = vmatprep.subr.mxu0 0.0
    %346 = vmatpush1.msra.mxu0 %v314
    %347 = vmatprep.subr.mxu0 0.0
    %348 = vmatpush1.msra.mxu0 0.0
    %349 = vmatprep.subr.mxu0 0.0
    %350 = vmatpush1.msra.mxu0 0.0
    %351 = vmatprep.subr.mxu0 0.0
    %352 = vmatpush1.msra.mxu0 0.0
    %353 = vmatprep.subr.mxu0 0.0
    %354 = vmatpush1.msra.mxu0 0.0
    %355 = vmatprep.subr.mxu0 0.0
    %356 = vmatpush1.msra.mxu0 0.0
    %357 = vmatprep.subr.mxu0 0.0
    %358 = vmatpush1.msra.mxu0 0.0
    %359 = vmatprep.subr.mxu0 0.0
    %360 = vmatpush1.msra.mxu0 0.0
    %361 = vmatprep.subr.mxu0 0.0
    %362 = vmatpush1.msra.mxu0 0.0
    %363 = vmatprep.subr.mxu0 0.0
    %364 = vmatpush1.msra.mxu0 0.0
    %365 = vmatprep.subr.mxu0 0.0
    %366 = vmatpush1.msra.mxu0 0.0
    %367 = vmatprep.subr.mxu0 0.0
    %368 = vmatpush1.msra.mxu0 0.0
    %369 = vmatprep.subr.mxu0 0.0
    %370 = vmatpush1.msra.mxu0 0.0
    %371 = vmatprep.subr.mxu0 0.0
    %372 = vmatpush1.msra.mxu0 0.0
    %373 = vmatprep.subr.mxu0 0.0
    %374 = vmatpush1.msra.mxu0 0.0
    %375 = vmatprep.subr.mxu0 0.0
    %376 = vmatpush1.msra.mxu0 0.0
    %377 = vmatprep.subr.mxu0 0.0
    %378 = vmatpush1.msra.mxu0 0.0
    %379 = vmatprep.mubr.f32.mxu0 0.0
    %380 = vmatmul.mubr.f32.gmra.mrb[0].mxu0 %v35
    %v381 = vpop.f32.mrb[0].mxu0
    %v382 = vadd.f32 0.0, %v381
    %v383 = vpop.f32.mrb[0].mxu0
    %384 = vdwg.mxu0
    %385 = vmatprep.subr.mxu0 0.0
    %386 = vmatpush1.msra.mxu0 %v299
    %387 = vmatprep.subr.mxu0 0.0
    %388 = vmatpush1.msra.mxu0 %v300
    %389 = vmatprep.subr.mxu0 0.0
    %390 = vmatpush1.msra.mxu0 %v301
    %391 = vmatprep.subr.mxu0 0.0
    %392 = vmatpush1.msra.mxu0 %v302
    %393 = vmatprep.subr.mxu0 0.0
    %394 = vmatpush1.msra.mxu0 %v303
    %395 = vmatprep.subr.mxu0 0.0
    %396 = vmatpush1.msra.mxu0 %v304
    %397 = vmatprep.subr.mxu0 0.0
    %398 = vmatpush1.msra.mxu0 %v305
    %399 = vmatprep.subr.mxu0 0.0
    %400 = vmatpush1.msra.mxu0 %v306
    %401 = vmatprep.subr.mxu0 0.0
    %402 = vmatpush1.msra.mxu0 %v307
    %403 = vmatprep.subr.mxu0 0.0
    %404 = vmatpush1.msra.mxu0 %v308
    %405 = vmatprep.subr.mxu0 0.0
    %406 = vmatpush1.msra.mxu0 %v309
    %407 = vmatprep.subr.mxu0 0.0
    %408 = vmatpush1.msra.mxu0 %v310
    %409 = vmatprep.subr.mxu0 0.0
    %410 = vmatpush1.msra.mxu0 %v311
    %411 = vmatprep.subr.mxu0 0.0
    %412 = vmatpush1.msra.mxu0 %v312
    %413 = vmatprep.subr.mxu0 0.0
    %414 = vmatpush1.msra.mxu0 %v313
    %415 = vmatprep.subr.mxu0 0.0
    %416 = vmatpush1.msra.mxu0 %v314
    %417 = vmatprep.subr.mxu0 0.0
    %418 = vmatpush1.msra.mxu0 0.0
    %419 = vmatprep.subr.mxu0 0.0
    %420 = vmatpush1.msra.mxu0 0.0
    %421 = vmatprep.subr.mxu0 0.0
    %422 = vmatpush1.msra.mxu0 0.0
    %423 = vmatprep.subr.mxu0 0.0
    %424 = vmatpush1.msra.mxu0 0.0
    %425 = vmatprep.subr.mxu0 0.0
    %426 = vmatpush1.msra.mxu0 0.0
    %427 = vmatprep.subr.mxu0 0.0
    %428 = vmatpush1.msra.mxu0 0.0
    %429 = vmatprep.subr.mxu0 0.0
    %430 = vmatpush1.msra.mxu0 0.0
    %431 = vmatprep.subr.mxu0 0.0
    %432 = vmatpush1.msra.mxu0 0.0
    %433 = vmatprep.subr.mxu0 0.0
    %434 = vmatpush1.msra.mxu0 0.0
    %435 = vmatprep.subr.mxu0 0.0
    %436 = vmatpush1.msra.mxu0 0.0
    %437 = vmatprep.subr.mxu0 0.0
    %438 = vmatpush1.msra.mxu0 0.0
    %439 = vmatprep.subr.mxu0 0.0
    %440 = vmatpush1.msra.mxu0 0.0
    %441 = vmatprep.subr.mxu0 0.0
    %442 = vmatpush1.msra.mxu0 0.0
    %443 = vmatprep.subr.mxu0 0.0
    %444 = vmatpush1.msra.mxu0 0.0
    %445 = vmatprep.subr.mxu0 0.0
    %446 = vmatpush1.msra.mxu0 0.0
    %447 = vmatprep.subr.mxu0 0.0
    %448 = vmatpush1.msra.mxu0 0.0
    %449 = vmatprep.mubr.f32.mxu0 0.0
    %450 = vmatmul.mubr.f32.gmra.mrb[0].mxu0 %v43
    %v451 = vpop.f32.mrb[0].mxu0
    %v452 = vadd.f32 0.0, %v451
    %v453 = vpop.f32.mrb[0].mxu0
    %454 = vdwg.mxu0
    %v455 = vmul.f32 %v382, 0.0625
    %v456 = vmul.f32 %v452, 0.0625
    %v457 = vmul.f32 %v455, %v455
    %v458 = vsub.f32 %v456, %v457
    %v459 = vmax.f32 %v458, 0.0
    %v460 = vadd.f32 %v459, 1e-05
    %v461 = vrsqrt.pop %v460
    %v462 = vld [vmem:[%s1] sm:$0x1]
    %v463 = vmul.f32 %v462, %v461
    %v464 = vld [vmem:[%s2] sm:$0x1]
    %v465 = vmul.f32 %v455, %v463
    %v466 = vsub.f32 %v464, %v465
    %v468 = vlaneseq
    %v469 = vshrl.u32 %v468, 7
    %v470 = vsub.s32 0, %v469
    %v471 = vrot.slane %v463, %v470
    %v473 = vmul.f32 %v27, %v471
    %v475 = vlaneseq
    %v476 = vshrl.u32 %v475, 7
    %v477 = vsub.s32 0, %v476
    %v478 = vrot.slane %v466, %v477
    %v480 = vadd.f32 %v473, %v478
    %481 = vst [vmem:[#allocation5] sm:$0xf] %v480
    // Predicated region
    $region18: #{tpu_custom_call.1} parent=1 // pred_check
      _
    $region19: #{tpu_custom_call.1} parent=1 // pred_check_branch
      %483 = sbr.rel (0) target = $region21
    $region20: #{tpu_custom_call.1} parent=1 // pred_region
      %s485 = ssub.s32 64, 64
      %486 = vsyncadd [#allocation4], %s485
      %s488 = sshll.u32 [#allocation5], 4
      %s489 = int_to_ptr.vmem [resolvable:$true] %s488
      %491 = dma.vmem_to_hbm [thread:$0]  %s489, 64, %s3, [#allocation4]
    $region21: #{tpu_custom_call.1} parent=1 // pred_fallthru
      _
    // Predicated region
    $region22: #{tpu_custom_call.1} parent=1 // pred_check
      _
    $region23: #{tpu_custom_call.1} parent=1 // pred_check_branch
      %493 = sbr.rel (0) target = $region25
    $region24: #{tpu_custom_call.1} parent=1 // pred_region
      %494 = dma.done [#allocation4], 64
    $region25: #{tpu_custom_call.1} parent=1 // pred_fallthru
      _
    %495 = vsyncpa [#allocation3], 1
    %496 = vsyncpa [#allocation4], 1

</llo_original>
